<compile_context>
chip_gen: v6e
topology: v6e:2x2x1
jax: 0.10.0
libtpu: 0.0.40
codegen_flags: <defaults>
</compile_context>

<pallas_src>
import functools

import numpy as np

import jax
import jax.numpy as jnp
from jax import lax
from jax.experimental import pallas as pl
from jax.experimental.pallas import tpu as pltpu


def _round_up(v, m):
    return (v + m - 1) // m * m


def _bag_attention_kernel(row_blk_ref, starts_ref, ends_ref, scores_ref, x_ref,
                          logits_ref, attn_ref, *, exact):
    del row_blk_ref                       # consumed by the index_maps only
    starts = starts_ref[...]              # (TB, 1) int32, window-local
    ends = ends_ref[...]                  # (TB, 1) int32, window-local
    scores = scores_ref[...]              # (1, W)  f32, already scaled
    x = x_ref[...]                        # (W, D_pad) mxu dtype

    w = scores.shape[1]

    # (1, W) iota broadcast against (TB, 1) bounds -> (TB, W) membership mask.
    col = lax.broadcasted_iota(jnp.int32, (1, w), 1)
    in_bag = (col >= starts) & (col < ends)

    # Masked softmax; all statistics in f32.
    masked = jnp.where(in_bag, scores, jnp.float32(-1e30))
    m = jnp.max(masked, axis=-1, keepdims=True)            # (TB, 1)
    e = jnp.exp(masked - m)                                 # masked -> exactly 0
    denom = jnp.sum(e, axis=-1, keepdims=True)              # (TB, 1)
    if exact:
        inv = 1.0 / denom                                   # exact f32 path
    else:
        inv = pl.reciprocal(denom, approx=True)             # EUP slot
    p = e * inv                                             # (TB, W) f32
    # Padded / empty bags contribute nothing (documented divergence: PyTorch's
    # empty-bag matmul also yields zeros).
    p = p * (ends > starts).astype(jnp.float32)

    # Weighted sum of this window's instance features on the MXU.
    precision = lax.Precision.HIGHEST if exact else None
    logits_ref[...] = jnp.dot(
        p.astype(x.dtype), x, precision=precision,
        preferred_element_type=jnp.float32).astype(logits_ref.dtype)

    # Bags partition rows -> summing bag rows gives the window's flat per-row
    # weights; replicate across 8 sublanes for an unmasked, aligned store.
    flat = jnp.sum(p, axis=0, keepdims=True)                # (1, W)
    attn_ref[...] = jnp.broadcast_to(flat, attn_ref.shape).astype(attn_ref.dtype)


def bag_attention(x, attn_w, scope, *, mxu_dtype=jnp.bfloat16):
    """x: (N, D) f32; attn_w: (D,) f32; scope: python list of end offsets.

    Returns (bag_logits (num_bags, D) f32, bag_attns list of per-bag softmax
    weights) matching PyTorch BagAttention.forward.  mxu_dtype=bfloat16 is
    recommended on v6e/v7x; float32 gives exact-precision parity.
    """
    n, d = x.shape
    num_bags = len(scope)
    assert num_bags >= 1
    scale = float(d) ** (-0.5)
    exact = jnp.dtype(mxu_dtype) == jnp.dtype(jnp.float32)

    # ---- host-side bag bookkeeping (scope is host metadata, as in PyTorch) --
    offsets = [0] + [int(s) for s in scope]
    bag_s = offsets[:-1]
    bag_e = offsets[1:]

    d_pad = _round_up(d, 128)
    n_pad128 = _round_up(max(n, 1), 128)

    # Bag-block size: up to 256 bags per step when there are many bags, capped
    # so there are at least two grid steps (v7x megacore) when possible.
    tb_cap = 256 if num_bags >= 256 else 128
    tb = max(8, min(tb_cap, _round_up(-(-num_bags // 2), 8)))

    # Row-window size W: ~tb average-sized bags per window, doubled until no
    # bag straddles an aligned W boundary (worst case: the whole row range).
    avg_rows = max(1, -(-n // num_bags))
    W = min(n_pad128, max(128, _round_up(avg_rows * tb, 128)))

    def _fits(wc):
        return all(s // wc == (e - 1) // wc for s, e in zip(bag_s, bag_e) if e > s)

    while W < n_pad128 and not _fits(W):
        W = min(n_pad128, W * 2)
    n_rows_pad = _round_up(max(n, 1), W)

    # Greedy grouping: consecutive bags share a block while they stay inside
    # one aligned W window and the block holds at most tb bags.
    groups = []                                   # [window_idx, [(bag, s, e)]]
    for i, (s, e) in enumerate(zip(bag_s, bag_e)):
        win = (s // W) if e > s else None
        if groups:
            gwin, gbags = groups[-1]
            if len(gbags) < tb and (win is None or gwin is None or win == gwin):
                if gwin is None and win is not None:
                    groups[-1][0] = win
                gbags.append((i, s, e))
                continue
        groups.append([win, [(i, s, e)]])
    for g in groups:
        if g[0] is None:
            g[0] = 0
    num_blocks = len(groups)

    row_blk = np.zeros((num_blocks,), np.int32)           # scalar-prefetched
    starts_l = np.zeros((num_blocks * tb, 1), np.int32)   # window-local bounds
    ends_l = np.zeros((num_blocks * tb, 1), np.int32)
    bag_row = np.zeros((num_bags,), np.int32)             # row in padded logits
    bag_grp = np.zeros((num_bags,), np.int32)
    bag_ls = np.zeros((num_bags,), np.int32)
    bag_le = np.zeros((num_bags,), np.int32)
    for gi, (win, bags) in enumerate(groups):
        row_blk[gi] = win
        base = win * W
        for slot, (bid, s, e) in enumerate(bags):
            bag_row[bid] = gi * tb + slot
            bag_grp[bid] = gi
            if e > s:
                starts_l[gi * tb + slot, 0] = s - base
                ends_l[gi * tb + slot, 0] = e - base
                bag_ls[bid] = s - base
                bag_le[bid] = e - base

    # ---- hoisted score matvec: exact f32, scale folded in --------------------
    scores = scale * jnp.sum(attn_w.astype(jnp.float32) * x.astype(jnp.float32),
                             axis=-1)
    if n == n_rows_pad:
        scores_p = scores.reshape(1, n_rows_pad)
    else:
        scores_p = jnp.zeros((1, n_rows_pad), jnp.float32).at[0, :n].set(scores)

    # Pad/cast x only when needed (aligned bf16 inputs upstream skip this
    # extra HBM round trip entirely).
    if n == n_rows_pad and d == d_pad and x.dtype == jnp.dtype(mxu_dtype):
        x_p = x
    else:
        x_p = jnp.zeros((n_rows_pad, d_pad), mxu_dtype).at[:n, :d].set(
            x.astype(mxu_dtype))

    # ---- generation-aware VMEM budget + cost hint ----------------------------
    item = jnp.dtype(mxu_dtype).itemsize
    step_bytes = (W * d_pad * item          # x window
                  + W * 4                   # scores window
                  + 2 * tb * 4              # starts / ends
                  + tb * d_pad * 4          # logits block
                  + 8 * W * 4)              # attn block
    needed = 2 * step_bytes + 6 * tb * W * 4 + (8 << 20)
    phys = 64 << 20
    get_info = getattr(pltpu, "get_tpu_info", None)
    if get_info is not None:
        try:
            phys = int(getattr(get_info(), "vmem_capacity_bytes", phys))
        except Exception:
            pass
    vmem_limit = int(max(4 << 20, min(needed, phys - (4 << 20))))

    flops = int(2 * num_blocks * tb * W * d_pad + 8 * num_blocks * tb * W)
    transcendentals = int(num_blocks * tb * W)
    bytes_accessed = int(num_blocks * step_bytes + num_blocks * 4)

    kernel = functools.partial(_bag_attention_kernel, exact=exact)

    logits_p, attn_p = pl.pallas_call(
        kernel,
        out_shape=(
            jax.ShapeDtypeStruct((num_blocks * tb, d_pad), jnp.float32),
            jax.ShapeDtypeStruct((num_blocks * 8, W), jnp.float32),
        ),
        grid_spec=pltpu.PrefetchScalarGridSpec(
            num_scalar_prefetch=1,
            grid=(num_blocks,),
            in_specs=[
                pl.BlockSpec((tb, 1), lambda g, rb: (g, 0)),         # starts
                pl.BlockSpec((tb, 1), lambda g, rb: (g, 0)),         # ends
                pl.BlockSpec((1, W), lambda g, rb: (0, rb[g])),      # scores win
                pl.BlockSpec((W, d_pad), lambda g, rb: (rb[g], 0)),  # x window
            ],
            out_specs=[
                pl.BlockSpec((tb, d_pad), lambda g, rb: (g, 0)),     # bag logits
                pl.BlockSpec((8, W), lambda g, rb: (g, 0)),          # flat attn
            ],
        ),
        compiler_params=pltpu.CompilerParams(
            dimension_semantics=("parallel",),
            vmem_limit_bytes=vmem_limit),
        cost_estimate=pl.CostEstimate(
            flops=flops, transcendentals=transcendentals,
            bytes_accessed=bytes_accessed),
    )(jnp.asarray(row_blk), jnp.asarray(starts_l), jnp.asarray(ends_l),
      scores_p, x_p)

    bag_logits = jnp.take(logits_p, jnp.asarray(bag_row), axis=0)[:, :d]
    attn_rows = attn_p[0::8, :]                    # (num_blocks, W) flat weights
    bag_attns = [attn_rows[int(bag_grp[i]), int(bag_ls[i]):int(bag_le[i])]
                 for i in range(num_bags)]
    return bag_logits, bag_attns


def _reference(x, attn_w, scope):
    """Exact f32 reference matching PyTorch BagAttention.forward."""
    scale = x.shape[-1] ** (-0.5)
    attn = scale * jnp.sum(attn_w * x, axis=-1)
    logits, attns = [], []
    start = 0
    for end in scope:
        end = int(end)
        bag_x = x[start:end]
        p = jax.nn.softmax(attn[start:end], axis=-1)
        attns.append(p)
        logits.append(jnp.sum(p[:, None] * bag_x, axis=0))   # exact f32 sum
        start = end
    return jnp.stack(logits), attns


if __name__ == "__main__":
    key = jax.random.PRNGKey(0)
    k_x, k_w = jax.random.split(key)

    N, D = 8, 32                       # 8 instances, hidden dim 32
    scope = [3, 5, 8]                  # three bags: rows [0:3), [3:5), [5:8)

    x = jax.random.normal(k_x, (N, D), dtype=jnp.float32)
    # Matches init.normal_(attn_w, mean=0, std=0.01) deterministically.
    attn_w = 0.01 * jax.random.normal(k_w, (D,), dtype=jnp.float32)

    ref_logits, ref_attns = _reference(x, attn_w, scope)

    # f32 MXU path: tight parity with the f32 reference.
    logits_f32, attns_f32 = bag_attention(x, attn_w, scope,
                                          mxu_dtype=jnp.float32)
    jax.block_until_ready(logits_f32)
    for a in attns_f32:
        jax.block_until_ready(a)
    assert logits_f32.shape == ref_logits.shape
    assert jnp.allclose(logits_f32, ref_logits, atol=1e-4, rtol=1e-4), (
        float(jnp.max(jnp.abs(logits_f32 - ref_logits))))
    for a, r in zip(attns_f32, ref_attns):
        assert a.shape == r.shape
        assert jnp.allclose(a, r, atol=1e-4, rtol=1e-4)

    # bf16 MXU path (recommended on v6e/v7x): looser tolerance on the logits;
    # attention weights stay f32-exact because scores/softmax are f32.
    logits_bf16, attns_bf16 = bag_attention(x, attn_w, scope,
                                            mxu_dtype=jnp.bfloat16)
    jax.block_until_ready(logits_bf16)
    assert jnp.allclose(logits_bf16, ref_logits, atol=3e-2, rtol=3e-2)
    for a, r in zip(attns_bf16, ref_attns):
        assert jnp.allclose(a, r, atol=1e-3, rtol=1e-3)

    print("KERNEL_OK")
</pallas_src>

<mosaic_0001>
module attributes {stable_mosaic.version = 11 : i64} {
  func.func @_bag_attention_kernel(%arg0: i32, %arg1: memref<1xi32, #tpu.memory_space<smem>>, %arg2: memref<8x1xi32, #tpu.memory_space<vmem>>, %arg3: memref<8x1xi32, #tpu.memory_space<vmem>>, %arg4: memref<1x128xf32, #tpu.memory_space<vmem>>, %arg5: memref<128x128xf32, #tpu.memory_space<vmem>>, %arg6: memref<8x128xf32, #tpu.memory_space<vmem>>, %arg7: memref<8x128xf32, #tpu.memory_space<vmem>>) attributes {dimension_semantics = [#tpu.dimension_semantics<parallel>], iteration_bounds = array<i64: 1>, scalar_prefetch = 1 : i64, scratch_operands = 0 : i64, tpu.core_type = #tpu.core_type<tc>, window_params = [{transform_indices = @transform_0, window_bounds = array<i64: 8, 1>}, {transform_indices = @transform_1, window_bounds = array<i64: 8, 1>}, {transform_indices = @transform_2, window_bounds = array<i64: 1, 128>}, {transform_indices = @transform_3, window_bounds = array<i64: 128, 128>}, {transform_indices = @transform_4, window_bounds = array<i64: 8, 128>}, {transform_indices = @transform_5, window_bounds = array<i64: 8, 128>}]} {
    %c0 = arith.constant 0 : index
    %c0_0 = arith.constant 0 : index
    %0 = vector.load %arg2[%c0, %c0_0] : memref<8x1xi32, #tpu.memory_space<vmem>>, vector<8x1xi32>
    %c0_1 = arith.constant 0 : index
    %c0_2 = arith.constant 0 : index
    %1 = vector.load %arg3[%c0_1, %c0_2] : memref<8x1xi32, #tpu.memory_space<vmem>>, vector<8x1xi32>
    %c0_3 = arith.constant 0 : index
    %c0_4 = arith.constant 0 : index
    %2 = vector.load %arg4[%c0_3, %c0_4] : memref<1x128xf32, #tpu.memory_space<vmem>>, vector<1x128xf32>
    %c0_5 = arith.constant 0 : index
    %c0_6 = arith.constant 0 : index
    %3 = vector.load %arg5[%c0_5, %c0_6] : memref<128x128xf32, #tpu.memory_space<vmem>>, vector<128x128xf32>
    %4 = tpu.iota {dimensions = array<i32: 1>} : vector<1x128xi32>
    %5 = vector.broadcast %4 : vector<1x128xi32> to vector<8x128xi32>
    %6 = vector.broadcast %0 : vector<8x1xi32> to vector<8x128xi32>
    %7 = arith.cmpi sge, %5, %6 : vector<8x128xi32>
    %8 = vector.broadcast %4 : vector<1x128xi32> to vector<8x128xi32>
    %9 = vector.broadcast %1 : vector<8x1xi32> to vector<8x128xi32>
    %10 = arith.cmpi slt, %8, %9 : vector<8x128xi32>
    %11 = arith.andi %7, %10 : vector<8x128xi1>
    %cst = arith.constant -1.000000e+30 : f32
    %12 = vector.shape_cast %2 : vector<1x128xf32> to vector<1x128xf32>
    %13 = vector.broadcast %12 : vector<1x128xf32> to vector<8x128xf32>
    %14 = vector.broadcast %cst : f32 to vector<8x128xf32>
    %15 = arith.select %11, %13, %14 : vector<8x128xi1>, vector<8x128xf32>
    %cst_7 = arith.constant dense<0xFF800000> : vector<8xf32>
    %16 = vector.multi_reduction <maximumf>, %15, %cst_7 [1] : vector<8x128xf32> to vector<8xf32>
    %17 = vector.shape_cast %16 : vector<8xf32> to vector<8x1xf32>
    %18 = vector.broadcast %17 : vector<8x1xf32> to vector<8x128xf32>
    %19 = arith.subf %15, %18 : vector<8x128xf32>
    %20 = math.exp %19 : vector<8x128xf32>
    %cst_8 = arith.constant dense<0.000000e+00> : vector<8xf32>
    %21 = vector.multi_reduction <add>, %20, %cst_8 [1] : vector<8x128xf32> to vector<8xf32>
    %22 = vector.shape_cast %21 : vector<8xf32> to vector<8x1xf32>
    %cst_9 = arith.constant 1.000000e+00 : f32
    %23 = vector.broadcast %cst_9 : f32 to vector<8x1xf32>
    %24 = arith.divf %23, %22 : vector<8x1xf32>
    %25 = vector.broadcast %24 : vector<8x1xf32> to vector<8x128xf32>
    %26 = arith.mulf %20, %25 : vector<8x128xf32>
    %27 = arith.cmpi sgt, %1, %0 : vector<8x1xi32>
    %28 = arith.extui %27 : vector<8x1xi1> to vector<8x1xi32>
    %29 = arith.sitofp %28 : vector<8x1xi32> to vector<8x1xf32>
    %30 = vector.broadcast %29 : vector<8x1xf32> to vector<8x128xf32>
    %31 = arith.mulf %26, %30 : vector<8x128xf32>
    %cst_10 = arith.constant dense<0.000000e+00> : vector<8x128xf32>
    %32 = tpu.matmul %31, %3, %cst_10 {dimension_numbers = #tpu.dot_dimension_numbers<[1], [0], [0], [1], [0, 0, 1, 1], [], []>, precision = #tpu.contract_precision<fp32>} : vector<8x128xf32>, vector<128x128xf32>, vector<8x128xf32> -> vector<8x128xf32>
    %c0_11 = arith.constant 0 : index
    %c0_12 = arith.constant 0 : index
    %33 = vector.load %arg6[%c0_11, %c0_12] : memref<8x128xf32, #tpu.memory_space<vmem>>, vector<8x128xf32>
    tpu.vector_store %arg6[%c0_11, %c0_12], %32 {strides = array<i32>} : memref<8x128xf32, #tpu.memory_space<vmem>>, vector<8x128xf32>,
    %cst_13 = arith.constant dense<0.000000e+00> : vector<128xf32>
    %34 = vector.multi_reduction <add>, %31, %cst_13 [0] : vector<8x128xf32> to vector<128xf32>
    %35 = vector.shape_cast %34 : vector<128xf32> to vector<1x128xf32>
    %36 = vector.shape_cast %35 : vector<1x128xf32> to vector<1x128xf32>
    %37 = vector.broadcast %36 : vector<1x128xf32> to vector<8x128xf32>
    %c0_14 = arith.constant 0 : index
    %c0_15 = arith.constant 0 : index
    %38 = vector.load %arg7[%c0_14, %c0_15] : memref<8x128xf32, #tpu.memory_space<vmem>>, vector<8x128xf32>
    tpu.vector_store %arg7[%c0_14, %c0_15], %37 {strides = array<i32>} : memref<8x128xf32, #tpu.memory_space<vmem>>, vector<8x128xf32>,
    return
  }
  func.func @transform_0(%arg0: i32, %arg1: memref<1xi32, #tpu.memory_space<smem>>) -> (i32, i32) {
    %c0_i32 = arith.constant 0 : i32
    %c0_i32_0 = arith.constant 0 : i32
    return %arg0, %c0_i32 : i32, i32
  }
  func.func @transform_1(%arg0: i32, %arg1: memref<1xi32, #tpu.memory_space<smem>>) -> (i32, i32) {
    %c0_i32 = arith.constant 0 : i32
    %c0_i32_0 = arith.constant 0 : i32
    return %arg0, %c0_i32 : i32, i32
  }
  func.func @transform_2(%arg0: i32, %arg1: memref<1xi32, #tpu.memory_space<smem>>) -> (i32, i32) {
    %0 = arith.index_cast %arg0 : i32 to index
    %1 = memref.load %arg1[%0] : memref<1xi32, #tpu.memory_space<smem>>
    %c0_i32 = arith.constant 0 : i32
    %c0_i32_0 = arith.constant 0 : i32
    return %c0_i32, %1 : i32, i32
  }
  func.func @transform_3(%arg0: i32, %arg1: memref<1xi32, #tpu.memory_space<smem>>) -> (i32, i32) {
    %0 = arith.index_cast %arg0 : i32 to index
    %1 = memref.load %arg1[%0] : memref<1xi32, #tpu.memory_space<smem>>
    %c0_i32 = arith.constant 0 : i32
    %c0_i32_0 = arith.constant 0 : i32
    return %1, %c0_i32 : i32, i32
  }
  func.func @transform_4(%arg0: i32, %arg1: memref<1xi32, #tpu.memory_space<smem>>) -> (i32, i32) {
    %c0_i32 = arith.constant 0 : i32
    %c0_i32_0 = arith.constant 0 : i32
    return %arg0, %c0_i32 : i32, i32
  }
  func.func @transform_5(%arg0: i32, %arg1: memref<1xi32, #tpu.memory_space<smem>>) -> (i32, i32) {
    %c0_i32 = arith.constant 0 : i32
    %c0_i32_0 = arith.constant 0 : i32
    return %arg0, %c0_i32 : i32, i32
  }
}

</mosaic_0001>

<llo_original>
// kernel: tpu_custom_call.1
$region0: #{tpu_custom_call.1}
  #allocation0 [shape = 'u32[]', space=smem, size = 0x4, offset = 0x4, fixed_abs, tag = 'smem constant byte address 0x4 - core index']
  #allocation1 [shape = 'u32[144,128]{1,0:T(1,128)}', space=vmem, size = 0x12000, scoped, tag = 'internal scratch']
  #allocation2 [shape = 's32[1]{0}', space=sflag, size = 0x4, scoped, tag = 'scoped memory for tpu_custom_call.1']
  #allocation3 [shape = 's32[1]{0:T(128)S(6)}', space=smem, size = 0x200, scoped, tag = 'prefetched SMEM operand 0']
  %s0 = inlined_call_operand.<no memory space> [shape: s32[1], index: 0, kind: input, shape index: {}]
  %s1 = inlined_call_operand.vmem [shape: s32[8,1], index: 1, kind: input, shape index: {}]
  %s2 = inlined_call_operand.vmem [shape: s32[8,1], index: 2, kind: input, shape index: {}]
  %s3 = inlined_call_operand.vmem [shape: f32[1,128], index: 3, kind: input, shape index: {}]
  %s4 = inlined_call_operand.hbm [shape: f32[128,128], index: 4, kind: input, shape index: {}]
  %s5 = inlined_call_operand.hbm [shape: f32[8,128], index: 5, kind: output, shape index: {0}]
  %s6 = inlined_call_operand.hbm [shape: f32[8,128], index: 6, kind: output, shape index: {1}]
  %7 = xla_tuple %s5, %s6
  %s8 = sld [smem:[#allocation0]]
  $region38: #{tpu_custom_call.1} parent=0
    _
  %s10 = ssub.s32 1, %s8
  %s11 = scalar_select 0, %s10, %s8
  %12 = sst [smem:[#allocation3]] %s0
  $region1: #{tpu_custom_call.1} parent=0
    #allocation4 [shape = 'u8[65536]{0}', space=vmem, size = 0x10000, scoped, tag = 'input window, operand 4, single buffered']
    #allocation5 [shape = 's32[1]{0}', space=sflag, size = 0x4, scoped, tag = 'scoped memory for tpu_custom_call.1']
    #allocation6 [shape = 's32[1]{0}', space=sflag, size = 0x4, scoped, tag = 'scoped memory for tpu_custom_call.1']
    #allocation7 [shape = 'u8[4096]{0}', space=vmem, size = 0x1000, scoped, tag = 'output window, operand 0, single buffered']
    #allocation8 [shape = 'u8[4096]{0}', space=vmem, size = 0x1000, scoped, tag = 'output window, operand 1, single buffered']
    #allocation9 [shape = 's32[1]{0}', space=sflag, size = 0x4, scoped, tag = 'scoped memory for tpu_custom_call.1']
    %13 = vsyncpa [#allocation5], 0
    %14 = vsyncpa [#allocation6], 0
    %15 = vsyncpa [#allocation9], 0
    // Predicated region
    $region2: #{tpu_custom_call.1} parent=1 // pred_check
      _
    $region3: #{tpu_custom_call.1} parent=1 // pred_check_branch
      %17 = sbr.rel (0) target = $region5
    $region4: #{tpu_custom_call.1} parent=1 // pred_region
      _
    $region5: #{tpu_custom_call.1} parent=1 // pred_fallthru
      _
    // Predicated region
    $region6: #{tpu_custom_call.1} parent=1 // pred_check
      _
    $region7: #{tpu_custom_call.1} parent=1 // pred_check_branch
      %19 = sbr.rel (0) target = $region9
    $region8: #{tpu_custom_call.1} parent=1 // pred_region
      _
    $region9: #{tpu_custom_call.1} parent=1 // pred_fallthru
      _
    // Predicated region
    $region10: #{tpu_custom_call.1} parent=1 // pred_check
      _
    $region11: #{tpu_custom_call.1} parent=1 // pred_check_branch
      %21 = sbr.rel (0) target = $region13
    $region12: #{tpu_custom_call.1} parent=1 // pred_region
      %s22 = sld [smem:[#allocation3]]
      %p23 = scmp.lt.s32.totalorder %s22, 0
      %s24 = scalar_select %p23, %s22, 0
      %s25 = scalar_lea.vmem %s3, %s24
      %s26 = sld [smem:[#allocation3]]
    $region13: #{tpu_custom_call.1} parent=1 // pred_fallthru
      _
    // Predicated region
    $region14: #{tpu_custom_call.1} parent=1 // pred_check
      _
    $region15: #{tpu_custom_call.1} parent=1 // pred_check_branch
      %28 = sbr.rel (0) target = $region17
    $region16: #{tpu_custom_call.1} parent=1 // pred_region
      %s29 = sld [smem:[#allocation3]]
      %s30 = smul.u32 16, %s29
      %s32 = ssub.s32 2048, 2048
      %33 = vsyncadd [#allocation5], %s32
      %s34 = smul.addr %s30, 128
      %s35 = scalar_lea.hbm %s4, %s34
      %s36 = sshll.u32 [#allocation4], 4
      %s37 = int_to_ptr.vmem [resolvable:$true] %s36
      %42 = dma.hbm_to_vmem [thread:$0]  %s35, 2048, %s37, [#allocation5], 128, 128, 8
    $region17: #{tpu_custom_call.1} parent=1 // pred_fallthru
      _
    // Predicated region
    $region18: #{tpu_custom_call.1} parent=1 // pred_check
      _
    $region19: #{tpu_custom_call.1} parent=1 // pred_check_branch
      %44 = sbr.rel (0) target = $region21
    $region20: #{tpu_custom_call.1} parent=1 // pred_region
      %45 = dma.done [#allocation5], 2048
    $region21: #{tpu_custom_call.1} parent=1 // pred_fallthru
      _
    %s46 = sld [smem:[#allocation3]]
    %p47 = scmp.lt.s32.totalorder %s46, 0
    %s48 = scalar_select %p47, %s46, 0
    %s49 = scalar_lea.vmem %s3, %s48
    %s50 = sld [smem:[#allocation3]]
    %p51 = scmp.lt.s32.totalorder %s50, 0
    %s52 = scalar_select %p51, %s50, 0
    %s53 = scalar_lea.vmem %s3, %s52
    %s54 = sld [smem:[#allocation3]]
    %s55 = sld [smem:[#allocation3]]
    %s56 = smul.u32 16, %s55
    %v57 = vld [vmem:[%s1] sm:$0xff]
    %v58 = vld [vmem:[%s2] sm:$0xff]
    %v59 = vld [vmem:[%s53] sm:$0x1]
    %v60 = vld [vmem:[#allocation4] sm:$0xff]
    %v61 = vld [vmem:[#allocation4 + $0x8] sm:$0xff]
    %v62 = vld [vmem:[#allocation4 + $0x10] sm:$0xff]
    %v63 = vld [vmem:[#allocation4 + $0x18] sm:$0xff]
    %v64 = vld [vmem:[#allocation4 + $0x20] sm:$0xff]
    %v65 = vld [vmem:[#allocation4 + $0x28] sm:$0xff]
    %v66 = vld [vmem:[#allocation4 + $0x30] sm:$0xff]
    %v67 = vld [vmem:[#allocation4 + $0x38] sm:$0xff]
    %v68 = vld [vmem:[#allocation4 + $0x40] sm:$0xff]
    %v69 = vld [vmem:[#allocation4 + $0x48] sm:$0xff]
    %v70 = vld [vmem:[#allocation4 + $0x50] sm:$0xff]
    %v71 = vld [vmem:[#allocation4 + $0x58] sm:$0xff]
    %v72 = vld [vmem:[#allocation4 + $0x60] sm:$0xff]
    %v73 = vld [vmem:[#allocation4 + $0x68] sm:$0xff]
    %v74 = vld [vmem:[#allocation4 + $0x70] sm:$0xff]
    %v75 = vld [vmem:[#allocation4 + $0x78] sm:$0xff]
    %v76 = vlaneseq
    %v77 = vand.u32 %v76, 127
    %78 = vset.pattern.permute.xlu0 0
    %79 = vperm.xlu0 %78, %v57
    %v80 = vpop.permute.xlu0 %79
    %vm81 = vcmp.ge.s32.totalorder %v77, %v80
    %82 = vset.pattern.permute.xlu0 0
    %83 = vperm.xlu0 %82, %v58
    %v84 = vpop.permute.xlu0 %83
    %vm85 = vcmp.lt.s32.totalorder %v77, %v84
    %vm86 = vmand %vm81, %vm85
    %v88 = vlaneseq
    %v89 = vshrl.u32 %v88, 7
    %v90 = vsub.s32 0, %v89
    %v91 = vrot.slane %v59, %v90
    %v93 = vsel %vm86, %v91, -1e+30
    %94 = vmax.xlane.f32.xlu0 %v93
    %v95 = vpop.xlane.xlu0 %94
    %v96 = vsub.f32 %v93, %v95
    %v97 = vmul.f32 %v96, 1.442695
    %v98 = vpow.pop %v97
    %99 = vadd.xlane.f32.xlu0 %v98
    %v100 = vpop.xlane.xlu0 %99
    %v101 = vrcp.pop %v100
    %v102 = vmul.f32 1.0, %v101
    %v103 = vmul.f32 %v98, %v102
    %vm104 = vcmp.gt.s32.totalorder %v58, %v57
    %v105 = vsel %vm104, 1, 0
    %v106 = vcvt.s32.f32 %v105
    %108 = vset.pattern.permute.xlu0 0
    %109 = vperm.xlu0 %108, %v106
    %v110 = vpop.permute.xlu0 %109
    %v112 = vmul.f32 %v103, %v110
    %113 = vmatprep.subr.mxu0 0.0
    %v114 = vand.u32 %v75, 4294901760
    %115 = vmatpush1.msra.mxu0 %v114
    %116 = vmatprep.subr.mxu0 0.0
    %v117 = vand.u32 %v74, 4294901760
    %118 = vmatpush1.msra.mxu0 %v117
    %119 = vmatprep.subr.mxu0 0.0
    %v120 = vand.u32 %v73, 4294901760
    %121 = vmatpush1.msra.mxu0 %v120
    %122 = vmatprep.subr.mxu0 0.0
    %v123 = vand.u32 %v72, 4294901760
    %124 = vmatpush1.msra.mxu0 %v123
    %125 = vmatprep.subr.mxu0 0.0
    %v126 = vand.u32 %v71, 4294901760
    %127 = vmatpush1.msra.mxu0 %v126
    %128 = vmatprep.subr.mxu0 0.0
    %v129 = vand.u32 %v70, 4294901760
    %130 = vmatpush1.msra.mxu0 %v129
    %131 = vmatprep.subr.mxu0 0.0
    %v132 = vand.u32 %v69, 4294901760
    %133 = vmatpush1.msra.mxu0 %v132
    %134 = vmatprep.subr.mxu0 0.0
    %v135 = vand.u32 %v68, 4294901760
    %136 = vmatpush1.msra.mxu0 %v135
    %137 = vmatprep.subr.mxu0 0.0
    %v138 = vand.u32 %v67, 4294901760
    %139 = vmatpush1.msra.mxu0 %v138
    %140 = vmatprep.subr.mxu0 0.0
    %v141 = vand.u32 %v66, 4294901760
    %142 = vmatpush1.msra.mxu0 %v141
    %143 = vmatprep.subr.mxu0 0.0
    %v144 = vand.u32 %v65, 4294901760
    %145 = vmatpush1.msra.mxu0 %v144
    %146 = vmatprep.subr.mxu0 0.0
    %v147 = vand.u32 %v64, 4294901760
    %148 = vmatpush1.msra.mxu0 %v147
    %149 = vmatprep.subr.mxu0 0.0
    %v150 = vand.u32 %v63, 4294901760
    %151 = vmatpush1.msra.mxu0 %v150
    %152 = vmatprep.subr.mxu0 0.0
    %v153 = vand.u32 %v62, 4294901760
    %154 = vmatpush1.msra.mxu0 %v153
    %155 = vmatprep.subr.mxu0 0.0
    %v156 = vand.u32 %v61, 4294901760
    %157 = vmatpush1.msra.mxu0 %v156
    %158 = vmatprep.subr.mxu0 0.0
    %v159 = vand.u32 %v60, 4294901760
    %160 = vmatpush1.msra.mxu0 %v159
    %161 = vmatprep.subr.mxu0 0.0
    %162 = vmatpush2.msra.mxu0 0.0
    %163 = vmatprep.subr.mxu0 0.0
    %164 = vmatpush2.msra.mxu0 0.0
    %165 = vmatprep.subr.mxu0 0.0
    %166 = vmatpush2.msra.mxu0 0.0
    %167 = vmatprep.subr.mxu0 0.0
    %168 = vmatpush2.msra.mxu0 0.0
    %169 = vmatprep.subr.mxu0 0.0
    %170 = vmatpush2.msra.mxu0 0.0
    %171 = vmatprep.subr.mxu0 0.0
    %172 = vmatpush2.msra.mxu0 0.0
    %173 = vmatprep.subr.mxu0 0.0
    %174 = vmatpush2.msra.mxu0 0.0
    %175 = vmatprep.subr.mxu0 0.0
    %176 = vmatpush2.msra.mxu0 0.0
    %177 = vmatprep.subr.mxu0 0.0
    %178 = vmatpush2.msra.mxu0 0.0
    %179 = vmatprep.subr.mxu0 0.0
    %180 = vmatpush2.msra.mxu0 0.0
    %181 = vmatprep.subr.mxu0 0.0
    %182 = vmatpush2.msra.mxu0 0.0
    %183 = vmatprep.subr.mxu0 0.0
    %184 = vmatpush2.msra.mxu0 0.0
    %185 = vmatprep.subr.mxu0 0.0
    %186 = vmatpush2.msra.mxu0 0.0
    %187 = vmatprep.subr.mxu0 0.0
    %188 = vmatpush2.msra.mxu0 0.0
    %189 = vmatprep.subr.mxu0 0.0
    %190 = vmatpush2.msra.mxu0 0.0
    %191 = vmatprep.subr.mxu0 0.0
    %192 = vmatpush2.msra.mxu0 0.0
    %193 = vmatprep.mubr.f32.mxu0 0.0
    %v194 = vand.u32 %v112, 4294901760
    %v195 = vsub.f32 %v112, %v194
    %v196 = vand.u32 %v195, 4294901760
    %v197 = vsub.f32 %v195, %v196
    %v198 = vand.u32 %v197, 4294901760
    %199 = vmatmul.mubr.f32.gmra.mxu0 %v198
    %v200 = vpop.f32.mrf.mxu0
    %v201 = vadd.f32 0.0, %v200
    %v202 = vpop.f32.mrf.mxu0
    %203 = vdwg.mxu0
    %204 = vmatprep.subr.mxu0 0.0
    %v205 = vand.u32 %v75, 4294901760
    %v206 = vsub.f32 %v75, %v205
    %v207 = vand.u32 %v206, 4294901760
    %v208 = vsub.f32 %v206, %v207
    %v209 = vand.u32 %v208, 4294901760
    %210 = vmatpush1.msra.mxu0 %v209
    %211 = vmatprep.subr.mxu0 0.0
    %v212 = vand.u32 %v74, 4294901760
    %v213 = vsub.f32 %v74, %v212
    %v214 = vand.u32 %v213, 4294901760
    %v215 = vsub.f32 %v213, %v214
    %v216 = vand.u32 %v215, 4294901760
    %217 = vmatpush1.msra.mxu0 %v216
    %218 = vmatprep.subr.mxu0 0.0
    %v219 = vand.u32 %v73, 4294901760
    %v220 = vsub.f32 %v73, %v219
    %v221 = vand.u32 %v220, 4294901760
    %v222 = vsub.f32 %v220, %v221
    %v223 = vand.u32 %v222, 4294901760
    %224 = vmatpush1.msra.mxu0 %v223
    %225 = vmatprep.subr.mxu0 0.0
    %v226 = vand.u32 %v72, 4294901760
    %v227 = vsub.f32 %v72, %v226
    %v228 = vand.u32 %v227, 4294901760
    %v229 = vsub.f32 %v227, %v228
    %v230 = vand.u32 %v229, 4294901760
    %231 = vmatpush1.msra.mxu0 %v230
    %232 = vmatprep.subr.mxu0 0.0
    %v233 = vand.u32 %v71, 4294901760
    %v234 = vsub.f32 %v71, %v233
    %v235 = vand.u32 %v234, 4294901760
    %v236 = vsub.f32 %v234, %v235
    %v237 = vand.u32 %v236, 4294901760
    %238 = vmatpush1.msra.mxu0 %v237
    %239 = vmatprep.subr.mxu0 0.0
    %v240 = vand.u32 %v70, 4294901760
    %v241 = vsub.f32 %v70, %v240
    %v242 = vand.u32 %v241, 4294901760
    %v243 = vsub.f32 %v241, %v242
    %v244 = vand.u32 %v243, 4294901760
    %245 = vmatpush1.msra.mxu0 %v244
    %246 = vmatprep.subr.mxu0 0.0
    %v247 = vand.u32 %v69, 4294901760
    %v248 = vsub.f32 %v69, %v247
    %v249 = vand.u32 %v248, 4294901760
    %v250 = vsub.f32 %v248, %v249
    %v251 = vand.u32 %v250, 4294901760
    %252 = vmatpush1.msra.mxu0 %v251
    %253 = vmatprep.subr.mxu0 0.0
    %v254 = vand.u32 %v68, 4294901760
    %v255 = vsub.f32 %v68, %v254
    %v256 = vand.u32 %v255, 4294901760
    %v257 = vsub.f32 %v255, %v256
    %v258 = vand.u32 %v257, 4294901760
    %259 = vmatpush1.msra.mxu0 %v258
    %260 = vmatprep.subr.mxu0 0.0
    %v261 = vand.u32 %v67, 4294901760
    %v262 = vsub.f32 %v67, %v261
    %v263 = vand.u32 %v262, 4294901760
    %v264 = vsub.f32 %v262, %v263
    %v265 = vand.u32 %v264, 4294901760
    %266 = vmatpush1.msra.mxu0 %v265
    %267 = vmatprep.subr.mxu0 0.0
    %v268 = vand.u32 %v66, 4294901760
    %v269 = vsub.f32 %v66, %v268
    %v270 = vand.u32 %v269, 4294901760
    %v271 = vsub.f32 %v269, %v270
    %v272 = vand.u32 %v271, 4294901760
    %273 = vmatpush1.msra.mxu0 %v272
    %274 = vmatprep.subr.mxu0 0.0
    %v275 = vand.u32 %v65, 4294901760
    %v276 = vsub.f32 %v65, %v275
    %v277 = vand.u32 %v276, 4294901760
    %v278 = vsub.f32 %v276, %v277
    %v279 = vand.u32 %v278, 4294901760
    %280 = vmatpush1.msra.mxu0 %v279
    %281 = vmatprep.subr.mxu0 0.0
    %v282 = vand.u32 %v64, 4294901760
    %v283 = vsub.f32 %v64, %v282
    %v284 = vand.u32 %v283, 4294901760
    %v285 = vsub.f32 %v283, %v284
    %v286 = vand.u32 %v285, 4294901760
    %287 = vmatpush1.msra.mxu0 %v286
    %288 = vmatprep.subr.mxu0 0.0
    %v289 = vand.u32 %v63, 4294901760
    %v290 = vsub.f32 %v63, %v289
    %v291 = vand.u32 %v290, 4294901760
    %v292 = vsub.f32 %v290, %v291
    %v293 = vand.u32 %v292, 4294901760
    %294 = vmatpush1.msra.mxu0 %v293
    %295 = vmatprep.subr.mxu0 0.0
    %v296 = vand.u32 %v62, 4294901760
    %v297 = vsub.f32 %v62, %v296
    %v298 = vand.u32 %v297, 4294901760
    %v299 = vsub.f32 %v297, %v298
    %v300 = vand.u32 %v299, 4294901760
    %301 = vmatpush1.msra.mxu0 %v300
    %302 = vmatprep.subr.mxu0 0.0
    %v303 = vand.u32 %v61, 4294901760
    %v304 = vsub.f32 %v61, %v303
    %v305 = vand.u32 %v304, 4294901760
    %v306 = vsub.f32 %v304, %v305
    %v307 = vand.u32 %v306, 4294901760
    %308 = vmatpush1.msra.mxu0 %v307
    %309 = vmatprep.subr.mxu0 0.0
    %v310 = vand.u32 %v60, 4294901760
    %v311 = vsub.f32 %v60, %v310
    %v312 = vand.u32 %v311, 4294901760
    %v313 = vsub.f32 %v311, %v312
    %v314 = vand.u32 %v313, 4294901760
    %315 = vmatpush1.msra.mxu0 %v314
    %316 = vmatprep.subr.mxu0 0.0
    %317 = vmatpush2.msra.mxu0 0.0
    %318 = vmatprep.subr.mxu0 0.0
    %319 = vmatpush2.msra.mxu0 0.0
    %320 = vmatprep.subr.mxu0 0.0
    %321 = vmatpush2.msra.mxu0 0.0
    %322 = vmatprep.subr.mxu0 0.0
    %323 = vmatpush2.msra.mxu0 0.0
    %324 = vmatprep.subr.mxu0 0.0
    %325 = vmatpush2.msra.mxu0 0.0
    %326 = vmatprep.subr.mxu0 0.0
    %327 = vmatpush2.msra.mxu0 0.0
    %328 = vmatprep.subr.mxu0 0.0
    %329 = vmatpush2.msra.mxu0 0.0
    %330 = vmatprep.subr.mxu0 0.0
    %331 = vmatpush2.msra.mxu0 0.0
    %332 = vmatprep.subr.mxu0 0.0
    %333 = vmatpush2.msra.mxu0 0.0
    %334 = vmatprep.subr.mxu0 0.0
    %335 = vmatpush2.msra.mxu0 0.0
    %336 = vmatprep.subr.mxu0 0.0
    %337 = vmatpush2.msra.mxu0 0.0
    %338 = vmatprep.subr.mxu0 0.0
    %339 = vmatpush2.msra.mxu0 0.0
    %340 = vmatprep.subr.mxu0 0.0
    %341 = vmatpush2.msra.mxu0 0.0
    %342 = vmatprep.subr.mxu0 0.0
    %343 = vmatpush2.msra.mxu0 0.0
    %344 = vmatprep.subr.mxu0 0.0
    %345 = vmatpush2.msra.mxu0 0.0
    %346 = vmatprep.subr.mxu0 0.0
    %347 = vmatpush2.msra.mxu0 0.0
    %348 = vmatprep.mubr.f32.mxu0 0.0
    %v349 = vand.u32 %v112, 4294901760
    %350 = vmatmul.mubr.f32.gmra.mxu0 %v349
    %v351 = vpop.f32.mrf.mxu0
    %v352 = vadd.f32 %v201, %v351
    %v353 = vpop.f32.mrf.mxu0
    %354 = vdwg.mxu0
    %355 = vmatprep.subr.mxu0 0.0
    %v356 = vand.u32 %v75, 4294901760
    %v357 = vsub.f32 %v75, %v356
    %358 = vmatpush1.msra.mxu0 %v357
    %359 = vmatprep.subr.mxu0 0.0
    %v360 = vand.u32 %v74, 4294901760
    %v361 = vsub.f32 %v74, %v360
    %362 = vmatpush1.msra.mxu0 %v361
    %363 = vmatprep.subr.mxu0 0.0
    %v364 = vand.u32 %v73, 4294901760
    %v365 = vsub.f32 %v73, %v364
    %366 = vmatpush1.msra.mxu0 %v365
    %367 = vmatprep.subr.mxu0 0.0
    %v368 = vand.u32 %v72, 4294901760
    %v369 = vsub.f32 %v72, %v368
    %370 = vmatpush1.msra.mxu0 %v369
    %371 = vmatprep.subr.mxu0 0.0
    %v372 = vand.u32 %v71, 4294901760
    %v373 = vsub.f32 %v71, %v372
    %374 = vmatpush1.msra.mxu0 %v373
    %375 = vmatprep.subr.mxu0 0.0
    %v376 = vand.u32 %v70, 4294901760
    %v377 = vsub.f32 %v70, %v376
    %378 = vmatpush1.msra.mxu0 %v377
    %379 = vmatprep.subr.mxu0 0.0
    %v380 = vand.u32 %v69, 4294901760
    %v381 = vsub.f32 %v69, %v380
    %382 = vmatpush1.msra.mxu0 %v381
    %383 = vmatprep.subr.mxu0 0.0
    %v384 = vand.u32 %v68, 4294901760
    %v385 = vsub.f32 %v68, %v384
    %386 = vmatpush1.msra.mxu0 %v385
    %387 = vmatprep.subr.mxu0 0.0
    %v388 = vand.u32 %v67, 4294901760
    %v389 = vsub.f32 %v67, %v388
    %390 = vmatpush1.msra.mxu0 %v389
    %391 = vmatprep.subr.mxu0 0.0
    %v392 = vand.u32 %v66, 4294901760
    %v393 = vsub.f32 %v66, %v392
    %394 = vmatpush1.msra.mxu0 %v393
    %395 = vmatprep.subr.mxu0 0.0
    %v396 = vand.u32 %v65, 4294901760
    %v397 = vsub.f32 %v65, %v396
    %398 = vmatpush1.msra.mxu0 %v397
    %399 = vmatprep.subr.mxu0 0.0
    %v400 = vand.u32 %v64, 4294901760
    %v401 = vsub.f32 %v64, %v400
    %402 = vmatpush1.msra.mxu0 %v401
    %403 = vmatprep.subr.mxu0 0.0
    %v404 = vand.u32 %v63, 4294901760
    %v405 = vsub.f32 %v63, %v404
    %406 = vmatpush1.msra.mxu0 %v405
    %407 = vmatprep.subr.mxu0 0.0
    %v408 = vand.u32 %v62, 4294901760
    %v409 = vsub.f32 %v62, %v408
    %410 = vmatpush1.msra.mxu0 %v409
    %411 = vmatprep.subr.mxu0 0.0
    %v412 = vand.u32 %v61, 4294901760
    %v413 = vsub.f32 %v61, %v412
    %414 = vmatpush1.msra.mxu0 %v413
    %415 = vmatprep.subr.mxu0 0.0
    %v416 = vand.u32 %v60, 4294901760
    %v417 = vsub.f32 %v60, %v416
    %418 = vmatpush1.msra.mxu0 %v417
    %419 = vmatprep.subr.mxu0 0.0
    %420 = vmatpush2.msra.mxu0 0.0
    %421 = vmatprep.subr.mxu0 0.0
    %422 = vmatpush2.msra.mxu0 0.0
    %423 = vmatprep.subr.mxu0 0.0
    %424 = vmatpush2.msra.mxu0 0.0
    %425 = vmatprep.subr.mxu0 0.0
    %426 = vmatpush2.msra.mxu0 0.0
    %427 = vmatprep.subr.mxu0 0.0
    %428 = vmatpush2.msra.mxu0 0.0
    %429 = vmatprep.subr.mxu0 0.0
    %430 = vmatpush2.msra.mxu0 0.0
    %431 = vmatprep.subr.mxu0 0.0
    %432 = vmatpush2.msra.mxu0 0.0
    %433 = vmatprep.subr.mxu0 0.0
    %434 = vmatpush2.msra.mxu0 0.0
    %435 = vmatprep.subr.mxu0 0.0
    %436 = vmatpush2.msra.mxu0 0.0
    %437 = vmatprep.subr.mxu0 0.0
    %438 = vmatpush2.msra.mxu0 0.0
    %439 = vmatprep.subr.mxu0 0.0
    %440 = vmatpush2.msra.mxu0 0.0
    %441 = vmatprep.subr.mxu0 0.0
    %442 = vmatpush2.msra.mxu0 0.0
    %443 = vmatprep.subr.mxu0 0.0
    %444 = vmatpush2.msra.mxu0 0.0
    %445 = vmatprep.subr.mxu0 0.0
    %446 = vmatpush2.msra.mxu0 0.0
    %447 = vmatprep.subr.mxu0 0.0
    %448 = vmatpush2.msra.mxu0 0.0
    %449 = vmatprep.subr.mxu0 0.0
    %450 = vmatpush2.msra.mxu0 0.0
    %451 = vmatprep.mubr.f32.mxu0 0.0
    %v452 = vand.u32 %v112, 4294901760
    %v453 = vsub.f32 %v112, %v452
    %454 = vmatmul.mubr.f32.gmra.mxu0 %v453
    %v455 = vpop.f32.mrf.mxu0
    %v456 = vadd.f32 %v352, %v455
    %v457 = vpop.f32.mrf.mxu0
    %458 = vdwg.mxu0
    %459 = vmatprep.subr.mxu0 0.0
    %v460 = vand.u32 %v75, 4294901760
    %461 = vmatpush1.msra.mxu0 %v460
    %462 = vmatprep.subr.mxu0 0.0
    %v463 = vand.u32 %v74, 4294901760
    %464 = vmatpush1.msra.mxu0 %v463
    %465 = vmatprep.subr.mxu0 0.0
    %v466 = vand.u32 %v73, 4294901760
    %467 = vmatpush1.msra.mxu0 %v466
    %468 = vmatprep.subr.mxu0 0.0
    %v469 = vand.u32 %v72, 4294901760
    %470 = vmatpush1.msra.mxu0 %v469
    %471 = vmatprep.subr.mxu0 0.0
    %v472 = vand.u32 %v71, 4294901760
    %473 = vmatpush1.msra.mxu0 %v472
    %474 = vmatprep.subr.mxu0 0.0
    %v475 = vand.u32 %v70, 4294901760
    %476 = vmatpush1.msra.mxu0 %v475
    %477 = vmatprep.subr.mxu0 0.0
    %v478 = vand.u32 %v69, 4294901760
    %479 = vmatpush1.msra.mxu0 %v478
    %480 = vmatprep.subr.mxu0 0.0
    %v481 = vand.u32 %v68, 4294901760
    %482 = vmatpush1.msra.mxu0 %v481
    %483 = vmatprep.subr.mxu0 0.0
    %v484 = vand.u32 %v67, 4294901760
    %485 = vmatpush1.msra.mxu0 %v484
    %486 = vmatprep.subr.mxu0 0.0
    %v487 = vand.u32 %v66, 4294901760
    %488 = vmatpush1.msra.mxu0 %v487
    %489 = vmatprep.subr.mxu0 0.0
    %v490 = vand.u32 %v65, 4294901760
    %491 = vmatpush1.msra.mxu0 %v490
    %492 = vmatprep.subr.mxu0 0.0
    %v493 = vand.u32 %v64, 4294901760
    %494 = vmatpush1.msra.mxu0 %v493
    %495 = vmatprep.subr.mxu0 0.0
    %v496 = vand.u32 %v63, 4294901760
    %497 = vmatpush1.msra.mxu0 %v496
    %498 = vmatprep.subr.mxu0 0.0
    %v499 = vand.u32 %v62, 4294901760
    %500 = vmatpush1.msra.mxu0 %v499
    %501 = vmatprep.subr.mxu0 0.0
    %v502 = vand.u32 %v61, 4294901760
    %503 = vmatpush1.msra.mxu0 %v502
    %504 = vmatprep.subr.mxu0 0.0
    %v505 = vand.u32 %v60, 4294901760
    %506 = vmatpush1.msra.mxu0 %v505
    %507 = vmatprep.subr.mxu0 0.0
    %508 = vmatpush2.msra.mxu0 0.0
    %509 = vmatprep.subr.mxu0 0.0
    %510 = vmatpush2.msra.mxu0 0.0
    %511 = vmatprep.subr.mxu0 0.0
    %512 = vmatpush2.msra.mxu0 0.0
    %513 = vmatprep.subr.mxu0 0.0
    %514 = vmatpush2.msra.mxu0 0.0
    %515 = vmatprep.subr.mxu0 0.0
    %516 = vmatpush2.msra.mxu0 0.0
    %517 = vmatprep.subr.mxu0 0.0
    %518 = vmatpush2.msra.mxu0 0.0
    %519 = vmatprep.subr.mxu0 0.0
    %520 = vmatpush2.msra.mxu0 0.0
    %521 = vmatprep.subr.mxu0 0.0
    %522 = vmatpush2.msra.mxu0 0.0
    %523 = vmatprep.subr.mxu0 0.0
    %524 = vmatpush2.msra.mxu0 0.0
    %525 = vmatprep.subr.mxu0 0.0
    %526 = vmatpush2.msra.mxu0 0.0
    %527 = vmatprep.subr.mxu0 0.0
    %528 = vmatpush2.msra.mxu0 0.0
    %529 = vmatprep.subr.mxu0 0.0
    %530 = vmatpush2.msra.mxu0 0.0
    %531 = vmatprep.subr.mxu0 0.0
    %532 = vmatpush2.msra.mxu0 0.0
    %533 = vmatprep.subr.mxu0 0.0
    %534 = vmatpush2.msra.mxu0 0.0
    %535 = vmatprep.subr.mxu0 0.0
    %536 = vmatpush2.msra.mxu0 0.0
    %537 = vmatprep.subr.mxu0 0.0
    %538 = vmatpush2.msra.mxu0 0.0
    %539 = vmatprep.mubr.f32.mxu0 0.0
    %v540 = vand.u32 %v112, 4294901760
    %v541 = vsub.f32 %v112, %v540
    %v542 = vand.u32 %v541, 4294901760
    %543 = vmatmul.mubr.f32.gmra.mxu0 %v542
    %v544 = vpop.f32.mrf.mxu0
    %v545 = vadd.f32 %v456, %v544
    %v546 = vpop.f32.mrf.mxu0
    %547 = vdwg.mxu0
    %548 = vmatprep.subr.mxu0 0.0
    %v549 = vand.u32 %v75, 4294901760
    %v550 = vsub.f32 %v75, %v549
    %v551 = vand.u32 %v550, 4294901760
    %552 = vmatpush1.msra.mxu0 %v551
    %553 = vmatprep.subr.mxu0 0.0
    %v554 = vand.u32 %v74, 4294901760
    %v555 = vsub.f32 %v74, %v554
    %v556 = vand.u32 %v555, 4294901760
    %557 = vmatpush1.msra.mxu0 %v556
    %558 = vmatprep.subr.mxu0 0.0
    %v559 = vand.u32 %v73, 4294901760
    %v560 = vsub.f32 %v73, %v559
    %v561 = vand.u32 %v560, 4294901760
    %562 = vmatpush1.msra.mxu0 %v561
    %563 = vmatprep.subr.mxu0 0.0
    %v564 = vand.u32 %v72, 4294901760
    %v565 = vsub.f32 %v72, %v564
    %v566 = vand.u32 %v565, 4294901760
    %567 = vmatpush1.msra.mxu0 %v566
    %568 = vmatprep.subr.mxu0 0.0
    %v569 = vand.u32 %v71, 4294901760
    %v570 = vsub.f32 %v71, %v569
    %v571 = vand.u32 %v570, 4294901760
    %572 = vmatpush1.msra.mxu0 %v571
    %573 = vmatprep.subr.mxu0 0.0
    %v574 = vand.u32 %v70, 4294901760
    %v575 = vsub.f32 %v70, %v574
    %v576 = vand.u32 %v575, 4294901760
    %577 = vmatpush1.msra.mxu0 %v576
    %578 = vmatprep.subr.mxu0 0.0
    %v579 = vand.u32 %v69, 4294901760
    %v580 = vsub.f32 %v69, %v579
    %v581 = vand.u32 %v580, 4294901760
    %582 = vmatpush1.msra.mxu0 %v581
    %583 = vmatprep.subr.mxu0 0.0
    %v584 = vand.u32 %v68, 4294901760
    %v585 = vsub.f32 %v68, %v584
    %v586 = vand.u32 %v585, 4294901760
    %587 = vmatpush1.msra.mxu0 %v586
    %588 = vmatprep.subr.mxu0 0.0
    %v589 = vand.u32 %v67, 4294901760
    %v590 = vsub.f32 %v67, %v589
    %v591 = vand.u32 %v590, 4294901760
    %592 = vmatpush1.msra.mxu0 %v591
    %593 = vmatprep.subr.mxu0 0.0
    %v594 = vand.u32 %v66, 4294901760
    %v595 = vsub.f32 %v66, %v594
    %v596 = vand.u32 %v595, 4294901760
    %597 = vmatpush1.msra.mxu0 %v596
    %598 = vmatprep.subr.mxu0 0.0
    %v599 = vand.u32 %v65, 4294901760
    %v600 = vsub.f32 %v65, %v599
    %v601 = vand.u32 %v600, 4294901760
    %602 = vmatpush1.msra.mxu0 %v601
    %603 = vmatprep.subr.mxu0 0.0
    %v604 = vand.u32 %v64, 4294901760
    %v605 = vsub.f32 %v64, %v604
    %v606 = vand.u32 %v605, 4294901760
    %607 = vmatpush1.msra.mxu0 %v606
    %608 = vmatprep.subr.mxu0 0.0
    %v609 = vand.u32 %v63, 4294901760
    %v610 = vsub.f32 %v63, %v609
    %v611 = vand.u32 %v610, 4294901760
    %612 = vmatpush1.msra.mxu0 %v611
    %613 = vmatprep.subr.mxu0 0.0
    %v614 = vand.u32 %v62, 4294901760
    %v615 = vsub.f32 %v62, %v614
    %v616 = vand.u32 %v615, 4294901760
    %617 = vmatpush1.msra.mxu0 %v616
    %618 = vmatprep.subr.mxu0 0.0
    %v619 = vand.u32 %v61, 4294901760
    %v620 = vsub.f32 %v61, %v619
    %v621 = vand.u32 %v620, 4294901760
    %622 = vmatpush1.msra.mxu0 %v621
    %623 = vmatprep.subr.mxu0 0.0
    %v624 = vand.u32 %v60, 4294901760
    %v625 = vsub.f32 %v60, %v624
    %v626 = vand.u32 %v625, 4294901760
    %627 = vmatpush1.msra.mxu0 %v626
    %628 = vmatprep.subr.mxu0 0.0
    %629 = vmatpush2.msra.mxu0 0.0
    %630 = vmatprep.subr.mxu0 0.0
    %631 = vmatpush2.msra.mxu0 0.0
    %632 = vmatprep.subr.mxu0 0.0
    %633 = vmatpush2.msra.mxu0 0.0
    %634 = vmatprep.subr.mxu0 0.0
    %635 = vmatpush2.msra.mxu0 0.0
    %636 = vmatprep.subr.mxu0 0.0
    %637 = vmatpush2.msra.mxu0 0.0
    %638 = vmatprep.subr.mxu0 0.0
    %639 = vmatpush2.msra.mxu0 0.0
    %640 = vmatprep.subr.mxu0 0.0
    %641 = vmatpush2.msra.mxu0 0.0
    %642 = vmatprep.subr.mxu0 0.0
    %643 = vmatpush2.msra.mxu0 0.0
    %644 = vmatprep.subr.mxu0 0.0
    %645 = vmatpush2.msra.mxu0 0.0
    %646 = vmatprep.subr.mxu0 0.0
    %647 = vmatpush2.msra.mxu0 0.0
    %648 = vmatprep.subr.mxu0 0.0
    %649 = vmatpush2.msra.mxu0 0.0
    %650 = vmatprep.subr.mxu0 0.0
    %651 = vmatpush2.msra.mxu0 0.0
    %652 = vmatprep.subr.mxu0 0.0
    %653 = vmatpush2.msra.mxu0 0.0
    %654 = vmatprep.subr.mxu0 0.0
    %655 = vmatpush2.msra.mxu0 0.0
    %656 = vmatprep.subr.mxu0 0.0
    %657 = vmatpush2.msra.mxu0 0.0
    %658 = vmatprep.subr.mxu0 0.0
    %659 = vmatpush2.msra.mxu0 0.0
    %660 = vmatprep.mubr.f32.mxu0 0.0
    %v661 = vand.u32 %v112, 4294901760
    %662 = vmatmul.mubr.f32.gmra.mxu0 %v661
    %v663 = vpop.f32.mrf.mxu0
    %v664 = vadd.f32 %v545, %v663
    %v665 = vpop.f32.mrf.mxu0
    %666 = vdwg.mxu0
    %667 = vmatprep.subr.mxu0 0.0
    %v668 = vand.u32 %v75, 4294901760
    %669 = vmatpush1.msra.mxu0 %v668
    %670 = vmatprep.subr.mxu0 0.0
    %v671 = vand.u32 %v74, 4294901760
    %672 = vmatpush1.msra.mxu0 %v671
    %673 = vmatprep.subr.mxu0 0.0
    %v674 = vand.u32 %v73, 4294901760
    %675 = vmatpush1.msra.mxu0 %v674
    %676 = vmatprep.subr.mxu0 0.0
    %v677 = vand.u32 %v72, 4294901760
    %678 = vmatpush1.msra.mxu0 %v677
    %679 = vmatprep.subr.mxu0 0.0
    %v680 = vand.u32 %v71, 4294901760
    %681 = vmatpush1.msra.mxu0 %v680
    %682 = vmatprep.subr.mxu0 0.0
    %v683 = vand.u32 %v70, 4294901760
    %684 = vmatpush1.msra.mxu0 %v683
    %685 = vmatprep.subr.mxu0 0.0
    %v686 = vand.u32 %v69, 4294901760
    %687 = vmatpush1.msra.mxu0 %v686
    %688 = vmatprep.subr.mxu0 0.0
    %v689 = vand.u32 %v68, 4294901760
    %690 = vmatpush1.msra.mxu0 %v689
    %691 = vmatprep.subr.mxu0 0.0
    %v692 = vand.u32 %v67, 4294901760
    %693 = vmatpush1.msra.mxu0 %v692
    %694 = vmatprep.subr.mxu0 0.0
    %v695 = vand.u32 %v66, 4294901760
    %696 = vmatpush1.msra.mxu0 %v695
    %697 = vmatprep.subr.mxu0 0.0
    %v698 = vand.u32 %v65, 4294901760
    %699 = vmatpush1.msra.mxu0 %v698
    %700 = vmatprep.subr.mxu0 0.0
    %v701 = vand.u32 %v64, 4294901760
    %702 = vmatpush1.msra.mxu0 %v701
    %703 = vmatprep.subr.mxu0 0.0
    %v704 = vand.u32 %v63, 4294901760
    %705 = vmatpush1.msra.mxu0 %v704
    %706 = vmatprep.subr.mxu0 0.0
    %v707 = vand.u32 %v62, 4294901760
    %708 = vmatpush1.msra.mxu0 %v707
    %709 = vmatprep.subr.mxu0 0.0
    %v710 = vand.u32 %v61, 4294901760
    %711 = vmatpush1.msra.mxu0 %v710
    %712 = vmatprep.subr.mxu0 0.0
    %v713 = vand.u32 %v60, 4294901760
    %714 = vmatpush1.msra.mxu0 %v713
    %715 = vmatprep.subr.mxu0 0.0
    %716 = vmatpush2.msra.mxu0 0.0
    %717 = vmatprep.subr.mxu0 0.0
    %718 = vmatpush2.msra.mxu0 0.0
    %719 = vmatprep.subr.mxu0 0.0
    %720 = vmatpush2.msra.mxu0 0.0
    %721 = vmatprep.subr.mxu0 0.0
    %722 = vmatpush2.msra.mxu0 0.0
    %723 = vmatprep.subr.mxu0 0.0
    %724 = vmatpush2.msra.mxu0 0.0
    %725 = vmatprep.subr.mxu0 0.0
    %726 = vmatpush2.msra.mxu0 0.0
    %727 = vmatprep.subr.mxu0 0.0
    %728 = vmatpush2.msra.mxu0 0.0
    %729 = vmatprep.subr.mxu0 0.0
    %730 = vmatpush2.msra.mxu0 0.0
    %731 = vmatprep.subr.mxu0 0.0
    %732 = vmatpush2.msra.mxu0 0.0
    %733 = vmatprep.subr.mxu0 0.0
    %734 = vmatpush2.msra.mxu0 0.0
    %735 = vmatprep.subr.mxu0 0.0
    %736 = vmatpush2.msra.mxu0 0.0
    %737 = vmatprep.subr.mxu0 0.0
    %738 = vmatpush2.msra.mxu0 0.0
    %739 = vmatprep.subr.mxu0 0.0
    %740 = vmatpush2.msra.mxu0 0.0
    %741 = vmatprep.subr.mxu0 0.0
    %742 = vmatpush2.msra.mxu0 0.0
    %743 = vmatprep.subr.mxu0 0.0
    %744 = vmatpush2.msra.mxu0 0.0
    %745 = vmatprep.subr.mxu0 0.0
    %746 = vmatpush2.msra.mxu0 0.0
    %747 = vmatprep.mubr.f32.mxu0 0.0
    %v748 = vand.u32 %v112, 4294901760
    %749 = vmatmul.mubr.f32.gmra.mxu0 %v748
    %v750 = vpop.f32.mrf.mxu0
    %v751 = vadd.f32 %v664, %v750
    %v752 = vpop.f32.mrf.mxu0
    %753 = vdwg.mxu0
    %754 = vst [vmem:[#allocation7] sm:$0xff] %v751
    %v755 = vrot.slane %v112, 4
    %v756 = vadd.f32 %v112, %v755
    %v757 = vrot.slane %v756, 2
    %v758 = vadd.f32 %v756, %v757
    %v759 = vrot.slane %v758, 1
    %v760 = vadd.f32 %v758, %v759
    %761 = vst [vmem:[#allocation8] sm:$0xff] %v760
    // Predicated region
    $region22: #{tpu_custom_call.1} parent=1 // pred_check
      _
    $region23: #{tpu_custom_call.1} parent=1 // pred_check_branch
      %763 = sbr.rel (0) target = $region25
    $region24: #{tpu_custom_call.1} parent=1 // pred_region
      %s765 = ssub.s32 128, 128
      %766 = vsyncadd [#allocation6], %s765
      %s768 = sshll.u32 [#allocation7], 4
      %s769 = int_to_ptr.vmem [resolvable:$true] %s768
      %771 = dma.vmem_to_hbm [thread:$0]  %s769, 128, %s5, [#allocation6]
    $region25: #{tpu_custom_call.1} parent=1 // pred_fallthru
      _
    // Predicated region
    $region26: #{tpu_custom_call.1} parent=1 // pred_check
      _
    $region27: #{tpu_custom_call.1} parent=1 // pred_check_branch
      %773 = sbr.rel (0) target = $region29
    $region28: #{tpu_custom_call.1} parent=1 // pred_region
      %s775 = ssub.s32 128, 128
      %776 = vsyncadd [#allocation9], %s775
      %s778 = sshll.u32 [#allocation8], 4
      %s779 = int_to_ptr.vmem [resolvable:$true] %s778
      %781 = dma.vmem_to_hbm [thread:$0]  %s779, 128, %s6, [#allocation9]
    $region29: #{tpu_custom_call.1} parent=1 // pred_fallthru
      _
    // Predicated region
    $region30: #{tpu_custom_call.1} parent=1 // pred_check
      _
    $region31: #{tpu_custom_call.1} parent=1 // pred_check_branch
      %783 = sbr.rel (0) target = $region33
    $region32: #{tpu_custom_call.1} parent=1 // pred_region
      %784 = dma.done [#allocation6], 128
    $region33: #{tpu_custom_call.1} parent=1 // pred_fallthru
      _
    // Predicated region
    $region34: #{tpu_custom_call.1} parent=1 // pred_check
      _
    $region35: #{tpu_custom_call.1} parent=1 // pred_check_branch
      %786 = sbr.rel (0) target = $region37
    $region36: #{tpu_custom_call.1} parent=1 // pred_region
      %787 = dma.done [#allocation9], 128
    $region37: #{tpu_custom_call.1} parent=1 // pred_fallthru
      _
    %788 = vsyncpa [#allocation5], 1
    %789 = vsyncpa [#allocation6], 1
    %790 = vsyncpa [#allocation9], 1

</llo_original>
